<compile_context>
chip_gen: v6e
topology: v6e:2x2x1
jax: 0.10.0
libtpu: 0.0.40
codegen_flags: <defaults>
</compile_context>

<pallas_src>
import functools

import jax
import jax.numpy as jnp
from jax import lax
from jax.experimental import pallas as pl
from jax.experimental.pallas import tpu as pltpu


def _as_pair(v):
    return (v, v) if isinstance(v, int) else tuple(v)


def _tree_max(vals):
    # Pairwise/tree reduction (breaks the serial dependency so VALU slots co-issue).
    vals = list(vals)
    while len(vals) > 1:
        nxt = [jnp.maximum(vals[i], vals[i + 1]) for i in range(0, len(vals) - 1, 2)]
        if len(vals) % 2:
            nxt.append(vals[-1])
        vals = nxt
    return vals[0]


def _largest_lane_tile(extent, cap):
    """Largest multiple of 128 that divides `extent`, capped at `cap` (None if none)."""
    best = None
    t = 128
    while t <= min(extent, cap):
        if extent % t == 0:
            best = t
        t += 128
    return best


_COMPILER_PARAMS_2D = pltpu.CompilerParams(
    dimension_semantics=("parallel", "parallel"),
    vmem_limit_bytes=32 * 1024 * 1024,
)


# ---------------------------------------------------------------------------
# Fast path: kh == 1, sh == 1, sc == kc (non-overlapping channel pooling)
# ---------------------------------------------------------------------------
def _tree_max_kernel(*refs):
    *in_refs, o_ref = refs
    o_ref[...] = _tree_max([r[...] for r in in_refs])


def _channel_pool_fast(x, kc, c_out):
    """x: (N, C, H, W) -> (N, c_out, H, W); pool over non-overlapping channel groups."""
    N, C, H, W = x.shape
    L = H * W
    itemsize = jnp.dtype(x.dtype).itemsize

    # Free reshape: x_flat[n, c', j*L + l] == x[n, c'*kc + j, l // W, l % W]
    x_flat = x[:, : c_out * kc].reshape(N, c_out, kc * L)

    # Lane tile: multiple of 128 dividing L, sized so one input block is ~<= 1 MiB.
    lane_cap = max(128, min(1024, ((1 << 20) // max(1, c_out * itemsize)) // 128 * 128))
    lt = _largest_lane_tile(L, lane_cap)  # guaranteed non-None (caller checks L % 128 == 0)
    n_lane = L // lt

    def in_idx(j):
        # Window element j lives j*L elements (= j*n_lane blocks) further along the lane axis.
        return lambda n, li, j=j: (n, 0, j * n_lane + li)

    out = pl.pallas_call(
        _tree_max_kernel,
        out_shape=jax.ShapeDtypeStruct((N, c_out, L), x.dtype),
        grid=(N, n_lane),
        in_specs=[pl.BlockSpec((1, c_out, lt), in_idx(j)) for j in range(kc)],
        out_specs=pl.BlockSpec((1, c_out, lt), lambda n, li: (n, 0, li)),
        compiler_params=_COMPILER_PARAMS_2D,
    )(*([x_flat] * kc))

    return out.reshape(N, c_out, H, W)


# ---------------------------------------------------------------------------
# General fallback: arbitrary (kh, kc) / (sh, sc)
# ---------------------------------------------------------------------------
def _window_max_kernel(x_ref, o_ref, *, kh, kc, sh, sc, h_out, c_out):
    # x_ref block: (1, C, H, Wt); o_ref block: (1, c_out, h_out, Wt)
    x = x_ref[...]
    wt = x.shape[-1]
    slices = []
    for dc in range(kc):          # static, unrolled window
        for dh in range(kh):
            slices.append(
                lax.slice(
                    x,
                    (0, dc, dh, 0),
                    (1, dc + (c_out - 1) * sc + 1, dh + (h_out - 1) * sh + 1, wt),
                    (1, sc, sh, 1),
                )
            )
    o_ref[...] = _tree_max(slices)


def _channel_pool_general(x, kh, kc, sh, sc, h_out, c_out):
    N, C, H, W = x.shape
    wt = _largest_lane_tile(W, 512) or W   # tile the lane dim when 128-aligned
    n_w = W // wt

    kernel = functools.partial(
        _window_max_kernel, kh=kh, kc=kc, sh=sh, sc=sc, h_out=h_out, c_out=c_out
    )
    return pl.pallas_call(
        kernel,
        out_shape=jax.ShapeDtypeStruct((N, c_out, h_out, W), x.dtype),
        grid=(N, n_w),
        in_specs=[pl.BlockSpec((1, C, H, wt), lambda n, wi: (n, 0, 0, wi))],
        out_specs=pl.BlockSpec((1, c_out, h_out, wt), lambda n, wi: (n, 0, 0, wi)),
        compiler_params=_COMPILER_PARAMS_2D,
    )(x)


# ---------------------------------------------------------------------------
# Public wrapper (matches the PyTorch module's forward)
# ---------------------------------------------------------------------------
def channel_max_pooling(x, kernel_size, stride):
    """x: (N, C, H, W). Equivalent to transpose(1,3) -> MaxPool2d -> transpose(1,3)."""
    kh, kc = _as_pair(kernel_size)   # (over H, over C) of the transposed tensor
    sh, sc = _as_pair(stride)
    N, C, H, W = x.shape
    h_out = (H - kh) // sh + 1
    c_out = (C - kc) // sc + 1
    L = H * W

    if kh == 1 and sh == 1 and sc == kc and L % 128 == 0:
        return _channel_pool_fast(x, kc, c_out)
    # TODO(synk): atypical configs (kh>1, overlapping channel windows, or H*W not
    # 128-aligned) use the simpler whole-(C,H) block fallback below.
    return _channel_pool_general(x, kh, kc, sh, sc, h_out, c_out)


def _reference(x, kernel_size, stride):
    # Pure-JAX reference mirroring the PyTorch forward.
    kh, kc = _as_pair(kernel_size)
    sh, sc = _as_pair(stride)
    xt = jnp.transpose(x, (0, 3, 2, 1))  # (N, W, H, C)
    init = -jnp.inf if jnp.issubdtype(x.dtype, jnp.floating) else jnp.iinfo(x.dtype).min
    pooled = lax.reduce_window(
        xt, init, lax.max,
        window_dimensions=(1, 1, kh, kc),
        window_strides=(1, 1, sh, sc),
        padding="VALID",
    )
    return jnp.transpose(pooled, (0, 3, 2, 1))  # back to (N, C_out, H_out, W)


if __name__ == "__main__":
    key = jax.random.PRNGKey(0)
    N, C, H, W = 2, 4, 16, 16
    x = jax.random.normal(key, (N, C, H, W), dtype=jnp.float32)

    # 1) Typical MMSMCNet usage: pool channels in non-overlapping pairs (fast path).
    out = jax.block_until_ready(channel_max_pooling(x, (1, 2), (1, 2)))
    ref = _reference(x, (1, 2), (1, 2))
    assert out.shape == ref.shape, (out.shape, ref.shape)
    assert jnp.allclose(out, ref), "fast-path mismatch vs reference"

    # 2) Overlapping channel window (stride 1) exercising the general fallback.
    out2 = jax.block_until_ready(channel_max_pooling(x, (1, 2), (1, 1)))
    ref2 = _reference(x, (1, 2), (1, 1))
    assert out2.shape == ref2.shape, (out2.shape, ref2.shape)
    assert jnp.allclose(out2, ref2), "general-path mismatch vs reference"

    print("KERNEL_OK")
</pallas_src>

<mosaic_0001>
module attributes {stable_mosaic.version = 11 : i64} {
  func.func @_tree_max_kernel(%arg0: i32, %arg1: i32, %arg2: memref<1x2x256xf32, #tpu.memory_space<vmem>>, %arg3: memref<1x2x256xf32, #tpu.memory_space<vmem>>, %arg4: memref<1x2x256xf32, #tpu.memory_space<vmem>>) attributes {dimension_semantics = [#tpu.dimension_semantics<parallel>, #tpu.dimension_semantics<parallel>], iteration_bounds = array<i64: 2, 1>, scalar_prefetch = 0 : i64, scratch_operands = 0 : i64, tpu.core_type = #tpu.core_type<tc>, window_params = [{transform_indices = @transform_0, window_bounds = array<i64: 1, 2, 256>}, {transform_indices = @transform_1, window_bounds = array<i64: 1, 2, 256>}, {transform_indices = @transform_2, window_bounds = array<i64: 1, 2, 256>}]} {
    %c0 = arith.constant 0 : index
    %c0_0 = arith.constant 0 : index
    %c0_1 = arith.constant 0 : index
    %0 = vector.load %arg2[%c0, %c0_0, %c0_1] : memref<1x2x256xf32, #tpu.memory_space<vmem>>, vector<1x2x256xf32>
    %c0_2 = arith.constant 0 : index
    %c0_3 = arith.constant 0 : index
    %c0_4 = arith.constant 0 : index
    %1 = vector.load %arg3[%c0_2, %c0_3, %c0_4] : memref<1x2x256xf32, #tpu.memory_space<vmem>>, vector<1x2x256xf32>
    %2 = arith.maximumf %0, %1 : vector<1x2x256xf32>
    %c0_5 = arith.constant 0 : index
    %c0_6 = arith.constant 0 : index
    %c0_7 = arith.constant 0 : index
    %3 = vector.load %arg4[%c0_5, %c0_6, %c0_7] : memref<1x2x256xf32, #tpu.memory_space<vmem>>, vector<1x2x256xf32>
    tpu.vector_store %arg4[%c0_5, %c0_6, %c0_7], %2 {strides = array<i32>} : memref<1x2x256xf32, #tpu.memory_space<vmem>>, vector<1x2x256xf32>,
    return
  }
  func.func @transform_0(%arg0: i32, %arg1: i32) -> (i32, i32, i32) {
    %c0_i32 = arith.constant 0 : i32
    %0 = arith.addi %c0_i32, %arg1 : i32
    %c0_i32_0 = arith.constant 0 : i32
    %c0_i32_1 = arith.constant 0 : i32
    return %arg0, %c0_i32_0, %0 : i32, i32, i32
  }
  func.func @transform_1(%arg0: i32, %arg1: i32) -> (i32, i32, i32) {
    %c1_i32 = arith.constant 1 : i32
    %0 = arith.addi %c1_i32, %arg1 : i32
    %c0_i32 = arith.constant 0 : i32
    %c0_i32_0 = arith.constant 0 : i32
    return %arg0, %c0_i32, %0 : i32, i32, i32
  }
  func.func @transform_2(%arg0: i32, %arg1: i32) -> (i32, i32, i32) {
    %c0_i32 = arith.constant 0 : i32
    %c0_i32_0 = arith.constant 0 : i32
    return %arg0, %c0_i32, %arg1 : i32, i32, i32
  }
}

</mosaic_0001>

<llo_original>
// kernel: tpu_custom_call.1
$region0: #{tpu_custom_call.1}
  #allocation0 [shape = 'u32[]', space=smem, size = 0x4, offset = 0x4, fixed_abs, tag = 'smem constant byte address 0x4 - core index']
  #allocation1 [shape = 'u32[144,128]{1,0:T(1,128)}', space=vmem, size = 0x12000, scoped, tag = 'internal scratch']
  %s0 = inlined_call_operand.hbm [shape: f32[2,2,512], index: 0, kind: input, shape index: {}]
  %s1 = inlined_call_operand.hbm [shape: f32[2,2,512], index: 1, kind: input, shape index: {}]
  %s2 = inlined_call_operand.hbm [shape: f32[2,2,256], index: 2, kind: output, shape index: {}]
  %s3 = sld [smem:[#allocation0]]
  $region49: #{tpu_custom_call.1} parent=0
    _
  %s5 = ssub.s32 1, %s3
  %s6 = scalar_select 0, %s5, %s3
  $region1: #{tpu_custom_call.1} parent=0
    #allocation2 [shape = 'u8[4096]{0}', space=vmem, size = 0x1000, scoped, tag = 'input window, operand 0']
    #allocation3 [shape = 's32[2]{0}', space=sflag, size = 0x8, scoped, tag = 'scoped memory for tpu_custom_call.1']
    #allocation4 [shape = 's32[2]{0}', space=sflag, size = 0x8, scoped, tag = 'scoped memory for tpu_custom_call.1']
    #allocation5 [shape = 'u8[4096]{0}', space=vmem, size = 0x1000, scoped, tag = 'input window, operand 1']
    #allocation6 [shape = 's32[2]{0}', space=sflag, size = 0x8, scoped, tag = 'scoped memory for tpu_custom_call.1']
    #allocation7 [shape = 'u8[4096]{0}', space=vmem, size = 0x1000, scoped, tag = 'output window, operand 0']
    %7 = vsyncpa [#allocation3], 0
    %s8 = scalar_lea.sflag [#allocation3], 1
    %9 = vsyncpa %s8, 0
    %10 = vsyncpa [#allocation6], 0
    %s11 = scalar_lea.sflag [#allocation6], 1
    %12 = vsyncpa %s11, 0
    %13 = vsyncpa [#allocation4], 0
    %s14 = scalar_lea.sflag [#allocation4], 1
    %15 = vsyncpa %s14, 0
    loop: start=0, step=1, limit=4
    $region2: #{tpu_custom_call.1} parent=1 // loop_pre_header
      _
    $region3: #{tpu_custom_call.1} parent=1 // loop_header
      %s17 = sphi 0, %s21
      %p18 = scmp.ge.s32.totalorder %s17, 4
      %s24 = sphi 0, %s36
      %s25 = sphi 0, %s32
      %s26 = sphi 0, %s24
      %s27 = sphi 0, %s25
      %s28 = sphi 0, %s26
      %s29 = sphi 0, %s27
      %s41 = sphi 0, %s43
      %s44 = sphi 0, %s41
      %s45 = sphi 0, %s44
      %s61 = sphi 0, %s45
      %s71 = sphi 0, %s73
      %s74 = sphi 0, %s71
      %s75 = sphi 0, %s74
      %s91 = sphi 0, %s75
      %s99 = sphi 0, %s101
      %s102 = sphi 0, %s99
      %s103 = sphi 0, %s102
      %s119 = sphi 0, %s103
    $region4: #{tpu_custom_call.1} parent=1 // loop_header_branch
      %20 = sbr.rel (%p18) target = $region8
    $region5: #{tpu_custom_call.1} parent=1 // loop_body
      %s22 = ssub.s32 %s17, 1
      %s23 = ssub.s32 %s17, 2
      %s30 = sadd.s32 1, %s25
      %p31 = scmp.ge.s32.totalorder %s30, 1
      %s32 = scalar_select %p31, 0, %s30
      %s33 = sadd.s32 1, %s24
      %s34 = scalar_select %p31, %s33, %s24
      %p35 = scmp.ge.s32.totalorder %s34, 2
      %s36 = scalar_select %p35, 0, %s34
      %s37 = ssub.s32 %s24, %s36
      %s38 = ssub.s32 %s25, %s32
      %s39 = sor.u32 %s37, %s38
      %p40 = scmp.eq.s32.totalorder %s39, 0
      %s42 = sadd.s32 %s41, 1
      %s43 = scalar_select %p40, %s41, %s42
      %p46 = pneg %p40
      %p47 = scmp.eq.s32.totalorder %s17, 1
      %p48 = por %p46, %p47
      %p49 = scmp.ne.s32.totalorder %s41, %s44
      %p50 = scmp.eq.s32.totalorder %s17, 0
      %p51 = por %p49, %p50
      %p52 = scmp.ne.s32.totalorder %s41, %s44
      %p53 = scmp.eq.s32.totalorder %s22, 1
      %p54 = por %p52, %p53
      %p55 = scmp.ne.s32.totalorder %s44, %s45
      %p56 = scmp.eq.s32.totalorder %s22, 0
      %p57 = por %p55, %p56
      %p58 = scmp.ne.s32.totalorder %s44, %s45
      %p59 = scmp.eq.s32.totalorder %s23, 1
      %p60 = por %p58, %p59
      %p62 = scmp.ne.s32.totalorder %s45, %s61
      %p63 = scmp.eq.s32.totalorder %s23, 0
      %p64 = por %p62, %p63
      %s65 = sadd.s32 %s25, 1
      %s66 = sadd.s32 %s32, 1
      %s67 = ssub.s32 %s24, %s36
      %s68 = ssub.s32 %s65, %s66
      %s69 = sor.u32 %s67, %s68
      %p70 = scmp.eq.s32.totalorder %s69, 0
      %s72 = sadd.s32 %s71, 1
      %s73 = scalar_select %p70, %s71, %s72
      %p76 = pneg %p70
      %p77 = scmp.eq.s32.totalorder %s17, 1
      %p78 = por %p76, %p77
      %p79 = scmp.ne.s32.totalorder %s71, %s74
      %p80 = scmp.eq.s32.totalorder %s17, 0
      %p81 = por %p79, %p80
      %p82 = scmp.ne.s32.totalorder %s71, %s74
      %p83 = scmp.eq.s32.totalorder %s22, 1
      %p84 = por %p82, %p83
      %p85 = scmp.ne.s32.totalorder %s74, %s75
      %p86 = scmp.eq.s32.totalorder %s22, 0
      %p87 = por %p85, %p86
      %p88 = scmp.ne.s32.totalorder %s74, %s75
      %p89 = scmp.eq.s32.totalorder %s23, 1
      %p90 = por %p88, %p89
      %p92 = scmp.ne.s32.totalorder %s75, %s91
      %p93 = scmp.eq.s32.totalorder %s23, 0
      %p94 = por %p92, %p93
      %s95 = ssub.s32 %s24, %s36
      %s96 = ssub.s32 %s25, %s32
      %s97 = sor.u32 %s95, %s96
      %p98 = scmp.eq.s32.totalorder %s97, 0
      %s100 = sadd.s32 %s99, 1
      %s101 = scalar_select %p98, %s99, %s100
      %p104 = pneg %p98
      %p105 = scmp.eq.s32.totalorder %s17, 1
      %p106 = por %p104, %p105
      %p107 = scmp.ne.s32.totalorder %s99, %s102
      %p108 = scmp.eq.s32.totalorder %s17, 0
      %p109 = por %p107, %p108
      %p110 = scmp.ne.s32.totalorder %s99, %s102
      %p111 = scmp.eq.s32.totalorder %s22, 1
      %p112 = por %p110, %p111
      %p113 = scmp.ne.s32.totalorder %s102, %s103
      %p114 = scmp.eq.s32.totalorder %s22, 0
      %p115 = por %p113, %p114
      %p116 = scmp.ne.s32.totalorder %s102, %s103
      %p117 = scmp.eq.s32.totalorder %s23, 1
      %p118 = por %p116, %p117
      %p120 = scmp.ne.s32.totalorder %s103, %s119
      %p121 = scmp.eq.s32.totalorder %s23, 0
      %p122 = por %p120, %p121
      %p123 = scmp.le.s32.totalorder 1, %s17
      %p124 = scmp.lt.s32.totalorder %s17, 3
      %p125 = pnand %p123, %p124
      %p126 = pneg %p125
      // Predicated region
      $region9: #{tpu_custom_call.1} parent=5 // pred_check
        _
      $region10: #{tpu_custom_call.1} parent=5 // pred_check_branch
        %128 = sbr.rel (%p125) target = $region12
      $region11: #{tpu_custom_call.1} parent=5 // pred_region
        %s129 = ssub.s32 %s17, 1
      $region12: #{tpu_custom_call.1} parent=5 // pred_fallthru
        _
      %p130 = scmp.lt.s32.totalorder %s17, 2
      // Predicated region
      $region13: #{tpu_custom_call.1} parent=5 // pred_check
        %p131 = pneg %p130
      $region14: #{tpu_custom_call.1} parent=5 // pred_check_branch
        %133 = sbr.rel (%p131) target = $region16
      $region15: #{tpu_custom_call.1} parent=5 // pred_region
        // Predicated region
        $region17: #{tpu_custom_call.1} parent=15 // pred_check
          %p134 = pneg %p51
        $region18: #{tpu_custom_call.1} parent=15 // pred_check_branch
          %136 = sbr.rel (%p134) target = $region20
        $region19: #{tpu_custom_call.1} parent=15 // pred_region
          %s137 = sand.u32 %s41, 1
          %s138 = scalar_lea.sflag [#allocation3], %s137
          %s139 = sand.u32 %s41, 1
          %s140 = smul.addr %s139, 4
          %s141 = scalar_lea.vmem [#allocation2], %s140
          %s142 = smul.u32 2, %s25
          %s144 = ssub.s32 64, 64
          %145 = vsyncadd %s138, %s144
          %s146 = smul.addr %s24, 4
          %s147 = sadd.s32 %s142, %s146
          %s148 = smul.addr %s147, 32
          %s149 = scalar_lea.hbm %s0, %s148
          %s151 = sshll.u32 %s141, 4
          %s152 = int_to_ptr.vmem [resolvable:$true] %s151
          %154 = dma.hbm_to_vmem [thread:$0]  %s149, 64, %s152, %s138
        $region20: #{tpu_custom_call.1} parent=15 // pred_fallthru
          _
        // Predicated region
        $region21: #{tpu_custom_call.1} parent=15 // pred_check
          %p155 = pneg %p81
        $region22: #{tpu_custom_call.1} parent=15 // pred_check_branch
          %157 = sbr.rel (%p155) target = $region24
        $region23: #{tpu_custom_call.1} parent=15 // pred_region
          %s158 = sand.u32 %s71, 1
          %s159 = scalar_lea.sflag [#allocation6], %s158
          %s160 = sand.u32 %s71, 1
          %s161 = smul.addr %s160, 4
          %s162 = scalar_lea.vmem [#allocation5], %s161
          %s163 = sadd.s32 %s25, 1
          %s164 = smul.u32 2, %s163
          %s166 = ssub.s32 64, 64
          %167 = vsyncadd %s159, %s166
          %s168 = smul.addr %s24, 4
          %s169 = sadd.s32 %s164, %s168
          %s170 = smul.addr %s169, 32
          %s171 = scalar_lea.hbm %s1, %s170
          %s173 = sshll.u32 %s162, 4
          %s174 = int_to_ptr.vmem [resolvable:$true] %s173
          %176 = dma.hbm_to_vmem [thread:$0]  %s171, 64, %s174, %s159
        $region24: #{tpu_custom_call.1} parent=15 // pred_fallthru
          _
      $region16: #{tpu_custom_call.1} parent=5 // pred_fallthru
        _
      %p177 = scmp.le.s32.totalorder 1, %s17
      %p178 = scmp.lt.s32.totalorder %s17, 3
      %p179 = pnand %p177, %p178
      %p180 = pneg %p179
      // Predicated region
      $region25: #{tpu_custom_call.1} parent=5 // pred_check
        _
      $region26: #{tpu_custom_call.1} parent=5 // pred_check_branch
        %182 = sbr.rel (%p179) target = $region28
      $region27: #{tpu_custom_call.1} parent=5 // pred_region
        %s183 = ssub.s32 %s17, 1
        %s184 = sand.u32 %s44, 1
        %s185 = scalar_lea.sflag [#allocation3], %s184
        %s186 = sand.u32 %s44, 1
        %s187 = smul.addr %s186, 4
        %s188 = scalar_lea.vmem [#allocation2], %s187
        // Predicated region
        $region29: #{tpu_custom_call.1} parent=27 // pred_check
          %p189 = pneg %p57
        $region30: #{tpu_custom_call.1} parent=27 // pred_check_branch
          %191 = sbr.rel (%p189) target = $region32
        $region31: #{tpu_custom_call.1} parent=27 // pred_region
          %192 = dma.done %s185, 64
        $region32: #{tpu_custom_call.1} parent=27 // pred_fallthru
          _
        %s193 = sand.u32 %s74, 1
        %s194 = scalar_lea.sflag [#allocation6], %s193
        %s195 = sand.u32 %s74, 1
        %s196 = smul.addr %s195, 4
        %s197 = scalar_lea.vmem [#allocation5], %s196
        // Predicated region
        $region33: #{tpu_custom_call.1} parent=27 // pred_check
          %p198 = pneg %p87
        $region34: #{tpu_custom_call.1} parent=27 // pred_check_branch
          %200 = sbr.rel (%p198) target = $region36
        $region35: #{tpu_custom_call.1} parent=27 // pred_region
          %201 = dma.done %s194, 64
        $region36: #{tpu_custom_call.1} parent=27 // pred_fallthru
          _
        %s202 = sand.u32 %s44, 1
        %s203 = scalar_lea.sflag [#allocation3], %s202
        %s204 = sand.u32 %s44, 1
        %s205 = smul.addr %s204, 4
        %s206 = scalar_lea.vmem [#allocation2], %s205
        %p207 = pneg %p57
        %p208 = pneg %p54
        %s209 = sand.u32 %s74, 1
        %s210 = scalar_lea.sflag [#allocation6], %s209
        %s211 = sand.u32 %s74, 1
        %s212 = smul.addr %s211, 4
        %s213 = scalar_lea.vmem [#allocation5], %s212
        %p214 = pneg %p87
        %p215 = pneg %p84
        %p216 = pneg %p115
        %p217 = pneg %p112
        %s218 = sand.u32 %s102, 1
        %s219 = scalar_lea.sflag [#allocation4], %s218
        %s220 = sand.u32 %s102, 1
        %s221 = smul.addr %s220, 4
        %s222 = scalar_lea.vmem [#allocation7], %s221
        %s223 = smul.u32 2, %s27
        %s224 = sadd.s32 %s27, 1
        %s225 = smul.u32 2, %s224
        %s226 = smul.u32 2, %s27
        %v227 = vld [vmem:[%s188] sm:$0xf]
        %v228 = vld [vmem:[%s197] sm:$0xf]
        %v229 = vmax.f32 %v227, %v228
        %230 = vst [vmem:[%s222] sm:$0xf] %v229
        %s231 = sand.u32 %s102, 1
        %s232 = scalar_lea.sflag [#allocation4], %s231
        %s233 = sand.u32 %s102, 1
        %s234 = smul.addr %s233, 4
        %s235 = scalar_lea.vmem [#allocation7], %s234
        // Predicated region
        $region37: #{tpu_custom_call.1} parent=27 // pred_check
          %p236 = pneg %p112
        $region38: #{tpu_custom_call.1} parent=27 // pred_check_branch
          %238 = sbr.rel (%p236) target = $region40
        $region39: #{tpu_custom_call.1} parent=27 // pred_region
          %s239 = smul.u32 2, %s27
          %s241 = ssub.s32 64, 64
          %242 = vsyncadd %s232, %s241
          %s243 = smul.addr %s26, 2
          %s244 = sadd.s32 %s239, %s243
          %s245 = smul.addr %s244, 32
          %s246 = scalar_lea.hbm %s2, %s245
          %s248 = sshll.u32 %s235, 4
          %s249 = int_to_ptr.vmem [resolvable:$true] %s248
          %251 = dma.vmem_to_hbm [thread:$0]  %s249, 64, %s246, %s232
        $region40: #{tpu_custom_call.1} parent=27 // pred_fallthru
          _
      $region28: #{tpu_custom_call.1} parent=5 // pred_fallthru
        _
      %p252 = scmp.le.s32.totalorder 2, %s17
      // Predicated region
      $region41: #{tpu_custom_call.1} parent=5 // pred_check
        %p253 = pneg %p252
      $region42: #{tpu_custom_call.1} parent=5 // pred_check_branch
        %255 = sbr.rel (%p253) target = $region44
      $region43: #{tpu_custom_call.1} parent=5 // pred_region
        %s256 = ssub.s32 %s17, 2
        // Predicated region
        $region45: #{tpu_custom_call.1} parent=43 // pred_check
          %p257 = pneg %p118
        $region46: #{tpu_custom_call.1} parent=43 // pred_check_branch
          %259 = sbr.rel (%p257) target = $region48
        $region47: #{tpu_custom_call.1} parent=43 // pred_region
          %s260 = sand.u32 %s103, 1
          %s261 = scalar_lea.sflag [#allocation4], %s260
          %s262 = sand.u32 %s103, 1
          %s263 = smul.addr %s262, 4
          %s264 = scalar_lea.vmem [#allocation7], %s263
          %265 = dma.done %s261, 64
        $region48: #{tpu_custom_call.1} parent=43 // pred_fallthru
          _
      $region44: #{tpu_custom_call.1} parent=5 // pred_fallthru
        _
    $region6: #{tpu_custom_call.1} parent=1 // loop_footer
      %s21 = sadd.s32 1, %s17
    $region7: #{tpu_custom_call.1} parent=1 // loop_footer_branch
      %16 = sbr.rel target = $region3
    $region8: #{tpu_custom_call.1} parent=1 // loop_exit
      _
    %266 = vsyncpa [#allocation3], 1
    %s267 = scalar_lea.sflag [#allocation3], 1
    %268 = vsyncpa %s267, 1
    %269 = vsyncpa [#allocation6], 1
    %s270 = scalar_lea.sflag [#allocation6], 1
    %271 = vsyncpa %s270, 1
    %272 = vsyncpa [#allocation4], 1
    %s273 = scalar_lea.sflag [#allocation4], 1
    %274 = vsyncpa %s273, 1

</llo_original>
